<compile_context>
chip_gen: v7x
topology: tpu7x:2x2x1
jax: 0.10.0
libtpu: 0.0.40
codegen_flags: <defaults>
</compile_context>

<pallas_src>
import jax
import jax.numpy as jnp
from jax.experimental import pallas as pl
from jax.experimental.pallas import tpu as pltpu

LANE = 128
SUBLANE = 8


def _round_up(x, m):
    return ((x + m - 1) // m) * m


def _make_kernel(h_p):
    """Fused forward: relu(x@W1+b1) -> relu(@W2+b2).  h_p = padded hidden dim."""

    def order_encoder_kernel(x_ref, w_ref, b_ref, o_ref):
        x = x_ref[...]                      # (TM, K_P)  f32
        w1 = w_ref[0]                       # (K_P, H_P)
        b1 = b_ref[0]                       # (1, H_P)
        h1 = jnp.dot(x, w1, preferred_element_type=jnp.float32) + b1
        h1 = jnp.maximum(h1, 0.0)           # (TM, H_P)

        w2 = w_ref[1][:h_p, :]              # (H_P, H_P) -- 128-aligned static slice
        b2 = b_ref[1]                       # (1, H_P)
        h2 = jnp.dot(h1, w2, preferred_element_type=jnp.float32) + b2
        o_ref[...] = jnp.maximum(h2, 0.0).astype(o_ref.dtype)

    return order_encoder_kernel


def init_order_encoder_params(key, input_dim, hidden_dim):
    """Mirror torch.nn.Linear default init: U[-1/sqrt(fan_in), +1/sqrt(fan_in)].

    Weights stored as (in_dim, out_dim) (transposed vs. PyTorch), biases 1-D.
    """
    ks = jax.random.split(key, 4)

    def linear(kw, kb, fan_in, fan_out):
        bound = 1.0 / jnp.sqrt(jnp.float32(fan_in))
        w = jax.random.uniform(kw, (fan_in, fan_out), jnp.float32, -bound, bound)
        b = jax.random.uniform(kb, (fan_out,), jnp.float32, -bound, bound)
        return w, b

    w1, b1 = linear(ks[0], ks[1], input_dim, hidden_dim)
    w2, b2 = linear(ks[2], ks[3], hidden_dim, hidden_dim)
    return (w1, b1, w2, b2)


def pack_order_encoder_params(params, input_dim, hidden_dim):
    """Pack the 4 parameter tensors into 2 lane-dense, 128-padded operands.

    Zero padding is mathematically inert: padded x columns are zero, padded
    weight rows/cols are zero, padded bias entries are zero, and ReLU(0) = 0.
    """
    w1, b1, w2, b2 = params
    k_p = _round_up(max(input_dim, hidden_dim), LANE)   # shared K footprint
    h_p = _round_up(hidden_dim, LANE)                   # padded output width

    w_stack = jnp.zeros((2, k_p, h_p), jnp.float32)
    w_stack = w_stack.at[0, :input_dim, :hidden_dim].set(w1)
    w_stack = w_stack.at[1, :hidden_dim, :hidden_dim].set(w2)

    b_stack = jnp.zeros((2, 1, h_p), jnp.float32)
    b_stack = b_stack.at[0, 0, :hidden_dim].set(b1)
    b_stack = b_stack.at[1, 0, :hidden_dim].set(b2)
    return w_stack, b_stack


def order_encoder_forward(order_states, packed_params, *, input_dim, hidden_dim):
    """Pallas forward.  Handles arbitrary leading dims like nn.Linear."""
    w_stack, b_stack = packed_params
    _, k_p, h_p = w_stack.shape

    orig_shape = order_states.shape
    x2 = order_states.reshape(-1, orig_shape[-1]).astype(jnp.float32)
    batch = x2.shape[0]

    # Batch tile: 256 rows when the batch is large, otherwise the smallest
    # multiple of 8 that covers the batch (one grid step).
    tm = 256 if batch >= 256 else _round_up(max(batch, 1), SUBLANE)
    b_pad = _round_up(batch, tm)
    grid = (b_pad // tm,)

    # Zero-pad input to (b_pad, k_p): lane-dense & MXU-aligned.
    x_pad = jnp.zeros((b_pad, k_p), jnp.float32).at[:batch, :input_dim].set(x2)

    flops = 2 * b_pad * (k_p * h_p + h_p * h_p)
    bytes_accessed = 4 * (b_pad * k_p + w_stack.size + b_stack.size + b_pad * h_p)

    out_pad = pl.pallas_call(
        _make_kernel(h_p),
        out_shape=jax.ShapeDtypeStruct((b_pad, h_p), jnp.float32),
        grid=grid,
        in_specs=[
            # x: tiled over batch
            pl.BlockSpec((tm, k_p), lambda i: (i, 0)),
            # stacked weights: resident in VMEM across all grid steps
            pl.BlockSpec((2, k_p, h_p), lambda i: (0, 0, 0)),
            # stacked biases: resident in VMEM across all grid steps
            pl.BlockSpec((2, 1, h_p), lambda i: (0, 0, 0)),
        ],
        out_specs=pl.BlockSpec((tm, h_p), lambda i: (i, 0)),
        compiler_params=pltpu.CompilerParams(
            dimension_semantics=("parallel",)),
        cost_estimate=pl.CostEstimate(
            flops=flops, transcendentals=0, bytes_accessed=bytes_accessed),
    )(x_pad, w_stack, b_stack)

    out = out_pad[:batch, :hidden_dim]
    return out.reshape(*orig_shape[:-1], hidden_dim)


def order_encoder_reference(order_states, params):
    """Pure-JAX reference matching the PyTorch module."""
    w1, b1, w2, b2 = params
    x = jax.nn.relu(order_states @ w1 + b1)
    return jax.nn.relu(x @ w2 + b2)


if __name__ == "__main__":
    input_dim, hidden_dim = 16, 32
    batch = 8

    key = jax.random.PRNGKey(0)
    k_params, k_x = jax.random.split(key)

    params = init_order_encoder_params(k_params, input_dim, hidden_dim)
    packed = pack_order_encoder_params(params, input_dim, hidden_dim)
    order_states = jax.random.normal(k_x, (batch, input_dim), dtype=jnp.float32)

    out = order_encoder_forward(order_states, packed,
                                input_dim=input_dim, hidden_dim=hidden_dim)
    out = jax.block_until_ready(out)

    ref = order_encoder_reference(order_states, params)
    assert out.shape == (batch, hidden_dim), f"bad shape {out.shape}"
    assert jnp.allclose(out, ref, atol=1e-5, rtol=1e-5), "mismatch vs reference"
    assert jnp.all(out >= 0.0), "ReLU output must be non-negative"

    print("KERNEL_OK")
</pallas_src>

<mosaic_0001>
module attributes {stable_mosaic.version = 11 : i64} {
  func.func @order_encoder_kernel(%arg0: i32, %arg1: memref<8x128xf32, #tpu.memory_space<vmem>>, %arg2: memref<2x128x128xf32, #tpu.memory_space<vmem>>, %arg3: memref<2x1x128xf32, #tpu.memory_space<vmem>>, %arg4: memref<8x128xf32, #tpu.memory_space<vmem>>) attributes {dimension_semantics = [#tpu.dimension_semantics<parallel>], iteration_bounds = array<i64: 1>, scalar_prefetch = 0 : i64, scratch_operands = 0 : i64, tpu.core_type = #tpu.core_type<tc>, window_params = [{transform_indices = @transform_0, window_bounds = array<i64: 8, 128>}, {pipeline_mode = #tpu.pipeline_mode<synchronous>, transform_indices = @transform_1, window_bounds = array<i64: 2, 128, 128>}, {pipeline_mode = #tpu.pipeline_mode<synchronous>, transform_indices = @transform_2, window_bounds = array<i64: 2, 1, 128>}, {transform_indices = @transform_3, window_bounds = array<i64: 8, 128>}]} {
    %c0 = arith.constant 0 : index
    %c0_0 = arith.constant 0 : index
    %0 = vector.load %arg1[%c0, %c0_0] : memref<8x128xf32, #tpu.memory_space<vmem>>, vector<8x128xf32>
    %c0_1 = arith.constant 0 : index
    %c0_2 = arith.constant 0 : index
    %c0_3 = arith.constant 0 : index
    %1 = vector.load %arg2[%c0_1, %c0_2, %c0_3] : memref<2x128x128xf32, #tpu.memory_space<vmem>>, vector<1x128x128xf32>
    %2 = vector.shape_cast %1 : vector<1x128x128xf32> to vector<128x128xf32>
    %c0_4 = arith.constant 0 : index
    %c0_5 = arith.constant 0 : index
    %c0_6 = arith.constant 0 : index
    %3 = vector.load %arg3[%c0_4, %c0_5, %c0_6] : memref<2x1x128xf32, #tpu.memory_space<vmem>>, vector<1x1x128xf32>
    %4 = vector.shape_cast %3 : vector<1x1x128xf32> to vector<1x128xf32>
    %cst = arith.constant dense<0.000000e+00> : vector<8x128xf32>
    %5 = tpu.matmul %0, %2, %cst {dimension_numbers = #tpu.dot_dimension_numbers<[1], [0], [0], [1], [0, 0, 1, 1], [], []>} : vector<8x128xf32>, vector<128x128xf32>, vector<8x128xf32> -> vector<8x128xf32>
    %6 = vector.broadcast %4 : vector<1x128xf32> to vector<8x128xf32>
    %7 = arith.addf %5, %6 : vector<8x128xf32>
    %cst_7 = arith.constant 0.000000e+00 : f32
    %8 = vector.broadcast %cst_7 : f32 to vector<8x128xf32>
    %9 = arith.maximumf %7, %8 : vector<8x128xf32>
    %c1 = arith.constant 1 : index
    %c0_8 = arith.constant 0 : index
    %c0_9 = arith.constant 0 : index
    %10 = vector.load %arg2[%c1, %c0_8, %c0_9] : memref<2x128x128xf32, #tpu.memory_space<vmem>>, vector<1x128x128xf32>
    %11 = vector.shape_cast %10 : vector<1x128x128xf32> to vector<128x128xf32>
    %c1_10 = arith.constant 1 : index
    %c0_11 = arith.constant 0 : index
    %c0_12 = arith.constant 0 : index
    %12 = vector.load %arg3[%c1_10, %c0_11, %c0_12] : memref<2x1x128xf32, #tpu.memory_space<vmem>>, vector<1x1x128xf32>
    %13 = vector.shape_cast %12 : vector<1x1x128xf32> to vector<1x128xf32>
    %cst_13 = arith.constant dense<0.000000e+00> : vector<8x128xf32>
    %14 = tpu.matmul %9, %11, %cst_13 {dimension_numbers = #tpu.dot_dimension_numbers<[1], [0], [0], [1], [0, 0, 1, 1], [], []>} : vector<8x128xf32>, vector<128x128xf32>, vector<8x128xf32> -> vector<8x128xf32>
    %15 = vector.broadcast %13 : vector<1x128xf32> to vector<8x128xf32>
    %16 = arith.addf %14, %15 : vector<8x128xf32>
    %cst_14 = arith.constant 0.000000e+00 : f32
    %17 = vector.broadcast %cst_14 : f32 to vector<8x128xf32>
    %18 = arith.maximumf %16, %17 : vector<8x128xf32>
    %c0_15 = arith.constant 0 : index
    %c0_16 = arith.constant 0 : index
    %19 = vector.load %arg4[%c0_15, %c0_16] : memref<8x128xf32, #tpu.memory_space<vmem>>, vector<8x128xf32>
    tpu.vector_store %arg4[%c0_15, %c0_16], %18 {strides = array<i32>} : memref<8x128xf32, #tpu.memory_space<vmem>>, vector<8x128xf32>,
    return
  }
  func.func @transform_0(%arg0: i32) -> (i32, i32) {
    %c0_i32 = arith.constant 0 : i32
    %c0_i32_0 = arith.constant 0 : i32
    return %arg0, %c0_i32 : i32, i32
  }
  func.func @transform_1(%arg0: i32) -> (i32, i32, i32) {
    %c0_i32 = arith.constant 0 : i32
    %c0_i32_0 = arith.constant 0 : i32
    %c0_i32_1 = arith.constant 0 : i32
    %c0_i32_2 = arith.constant 0 : i32
    return %c0_i32, %c0_i32_0, %c0_i32_1 : i32, i32, i32
  }
  func.func @transform_2(%arg0: i32) -> (i32, i32, i32) {
    %c0_i32 = arith.constant 0 : i32
    %c0_i32_0 = arith.constant 0 : i32
    %c0_i32_1 = arith.constant 0 : i32
    %c0_i32_2 = arith.constant 0 : i32
    return %c0_i32, %c0_i32_0, %c0_i32_1 : i32, i32, i32
  }
  func.func @transform_3(%arg0: i32) -> (i32, i32) {
    %c0_i32 = arith.constant 0 : i32
    %c0_i32_0 = arith.constant 0 : i32
    return %arg0, %c0_i32 : i32, i32
  }
}

</mosaic_0001>

<llo_original>
// kernel: tpu_custom_call.1
$region0: #{tpu_custom_call.1}
  #allocation0 [shape = 'u32[]', space=smem, size = 0x4, offset = 0x4, fixed_abs, tag = 'smem constant byte address 0x4 - core index']
  #allocation1 [shape = 'u32[144,128]{1,0:T(1,128)}', space=vmem, size = 0x12000, scoped, tag = 'internal scratch']
  %s0 = inlined_call_operand.hbm [shape: f32[8,128], index: 0, kind: input, shape index: {}]
  %s1 = inlined_call_operand.hbm [shape: f32[2,128,128], index: 1, kind: input, shape index: {}]
  %s2 = inlined_call_operand.vmem [shape: f32[2,1,128], index: 2, kind: input, shape index: {}]
  %s3 = inlined_call_operand.hbm [shape: f32[8,128], index: 3, kind: output, shape index: {}]
  %s4 = sld [smem:[#allocation0]]
  $region30: #{tpu_custom_call.1} parent=0
    _
  %s6 = ssub.s32 1, %s4
  %s7 = scalar_select 0, %s6, %s4
  $region1: #{tpu_custom_call.1} parent=0
    #allocation2 [shape = 'u8[4096]{0}', space=vmem, size = 0x1000, scoped, tag = 'input window, operand 0, single buffered']
    #allocation3 [shape = 's32[1]{0}', space=sflag, size = 0x4, scoped, tag = 'scoped memory for tpu_custom_call.1']
    #allocation4 [shape = 's32[1]{0}', space=sflag, size = 0x4, scoped, tag = 'scoped memory for tpu_custom_call.1']
    #allocation5 [shape = 'u8[131072]{0}', space=vmem, size = 0x20000, scoped, tag = 'input window, operand 1, single buffered']
    #allocation6 [shape = 's32[1]{0}', space=sflag, size = 0x4, scoped, tag = 'scoped memory for tpu_custom_call.1']
    #allocation7 [shape = 'u8[4096]{0}', space=vmem, size = 0x1000, scoped, tag = 'output window, operand 0, single buffered']
    %8 = vsyncpa [#allocation3], 0
    %9 = vsyncpa [#allocation6], 0
    %10 = vsyncpa [#allocation4], 0
    // Predicated region
    $region2: #{tpu_custom_call.1} parent=1 // pred_check
      _
    $region3: #{tpu_custom_call.1} parent=1 // pred_check_branch
      %12 = sbr.rel (0) target = $region5
    $region4: #{tpu_custom_call.1} parent=1 // pred_region
      %s14 = ssub.s32 128, 128
      %15 = vsyncadd [#allocation3], %s14
      %s17 = sshll.u32 [#allocation2], 4
      %s18 = int_to_ptr.vmem [resolvable:$true] %s17
      %20 = dma.hbm_to_vmem [thread:$0]  %s0, 128, %s18, [#allocation3]
    $region5: #{tpu_custom_call.1} parent=1 // pred_fallthru
      _
    // Predicated region
    $region6: #{tpu_custom_call.1} parent=1 // pred_check
      _
    $region7: #{tpu_custom_call.1} parent=1 // pred_check_branch
      %22 = sbr.rel (0) target = $region9
    $region8: #{tpu_custom_call.1} parent=1 // pred_region
      %s24 = ssub.s32 4096, 4096
      %25 = vsyncadd [#allocation6], %s24
      %s26 = sshll.u32 [#allocation5], 4
      %s27 = int_to_ptr.vmem [resolvable:$true] %s26
      %32 = dma.hbm_to_vmem [thread:$0]  %s1, 4096, %s27, [#allocation6], 128, 128, 8
    $region9: #{tpu_custom_call.1} parent=1 // pred_fallthru
      _
    // Predicated region
    $region10: #{tpu_custom_call.1} parent=1 // pred_check
      _
    $region11: #{tpu_custom_call.1} parent=1 // pred_check_branch
      %34 = sbr.rel (0) target = $region13
    $region12: #{tpu_custom_call.1} parent=1 // pred_region
      _
    $region13: #{tpu_custom_call.1} parent=1 // pred_fallthru
      _
    // Predicated region
    $region14: #{tpu_custom_call.1} parent=1 // pred_check
      _
    $region15: #{tpu_custom_call.1} parent=1 // pred_check_branch
      %36 = sbr.rel (0) target = $region17
    $region16: #{tpu_custom_call.1} parent=1 // pred_region
      %37 = dma.done [#allocation3], 128
    $region17: #{tpu_custom_call.1} parent=1 // pred_fallthru
      _
    // Predicated region
    $region18: #{tpu_custom_call.1} parent=1 // pred_check
      _
    $region19: #{tpu_custom_call.1} parent=1 // pred_check_branch
      %39 = sbr.rel (0) target = $region21
    $region20: #{tpu_custom_call.1} parent=1 // pred_region
      %40 = dma.done [#allocation6], 4096
    $region21: #{tpu_custom_call.1} parent=1 // pred_fallthru
      _
    %v41 = vld [vmem:[#allocation2] sm:$0xff]
    %v42 = vld [vmem:[#allocation5] sm:$0xff]
    %v43 = vld [vmem:[#allocation5 + $0x8] sm:$0xff]
    %v44 = vld [vmem:[#allocation5 + $0x10] sm:$0xff]
    %v45 = vld [vmem:[#allocation5 + $0x18] sm:$0xff]
    %v46 = vld [vmem:[#allocation5 + $0x20] sm:$0xff]
    %v47 = vld [vmem:[#allocation5 + $0x28] sm:$0xff]
    %v48 = vld [vmem:[#allocation5 + $0x30] sm:$0xff]
    %v49 = vld [vmem:[#allocation5 + $0x38] sm:$0xff]
    %v50 = vld [vmem:[#allocation5 + $0x40] sm:$0xff]
    %v51 = vld [vmem:[#allocation5 + $0x48] sm:$0xff]
    %v52 = vld [vmem:[#allocation5 + $0x50] sm:$0xff]
    %v53 = vld [vmem:[#allocation5 + $0x58] sm:$0xff]
    %v54 = vld [vmem:[#allocation5 + $0x60] sm:$0xff]
    %v55 = vld [vmem:[#allocation5 + $0x68] sm:$0xff]
    %v56 = vld [vmem:[#allocation5 + $0x70] sm:$0xff]
    %v57 = vld [vmem:[#allocation5 + $0x78] sm:$0xff]
    %v58 = vld [vmem:[%s2] sm:$0x1]
    %v60 = vlaneseq
    %v61 = vshrl.u32 %v60, 7
    %v62 = vsub.s32 0, %v61
    %v63 = vrot.slane %v58, %v62
    %65 = vmatprep.subr.mxu0 0.0
    %66 = vmatpush1.msra.mxu0 %v42
    %67 = vmatprep.subr.mxu0 0.0
    %68 = vmatpush1.msra.mxu0 %v43
    %69 = vmatprep.subr.mxu0 0.0
    %70 = vmatpush1.msra.mxu0 %v44
    %71 = vmatprep.subr.mxu0 0.0
    %72 = vmatpush1.msra.mxu0 %v45
    %73 = vmatprep.subr.mxu0 0.0
    %74 = vmatpush1.msra.mxu0 %v46
    %75 = vmatprep.subr.mxu0 0.0
    %76 = vmatpush1.msra.mxu0 %v47
    %77 = vmatprep.subr.mxu0 0.0
    %78 = vmatpush1.msra.mxu0 %v48
    %79 = vmatprep.subr.mxu0 0.0
    %80 = vmatpush1.msra.mxu0 %v49
    %81 = vmatprep.subr.mxu0 0.0
    %82 = vmatpush1.msra.mxu0 %v50
    %83 = vmatprep.subr.mxu0 0.0
    %84 = vmatpush1.msra.mxu0 %v51
    %85 = vmatprep.subr.mxu0 0.0
    %86 = vmatpush1.msra.mxu0 %v52
    %87 = vmatprep.subr.mxu0 0.0
    %88 = vmatpush1.msra.mxu0 %v53
    %89 = vmatprep.subr.mxu0 0.0
    %90 = vmatpush1.msra.mxu0 %v54
    %91 = vmatprep.subr.mxu0 0.0
    %92 = vmatpush1.msra.mxu0 %v55
    %93 = vmatprep.subr.mxu0 0.0
    %94 = vmatpush1.msra.mxu0 %v56
    %95 = vmatprep.subr.mxu0 0.0
    %96 = vmatpush1.msra.mxu0 %v57
    %97 = vmatprep.subr.mxu0 0.0
    %98 = vmatpush1.msra.mxu0 0.0
    %99 = vmatprep.subr.mxu0 0.0
    %100 = vmatpush1.msra.mxu0 0.0
    %101 = vmatprep.subr.mxu0 0.0
    %102 = vmatpush1.msra.mxu0 0.0
    %103 = vmatprep.subr.mxu0 0.0
    %104 = vmatpush1.msra.mxu0 0.0
    %105 = vmatprep.subr.mxu0 0.0
    %106 = vmatpush1.msra.mxu0 0.0
    %107 = vmatprep.subr.mxu0 0.0
    %108 = vmatpush1.msra.mxu0 0.0
    %109 = vmatprep.subr.mxu0 0.0
    %110 = vmatpush1.msra.mxu0 0.0
    %111 = vmatprep.subr.mxu0 0.0
    %112 = vmatpush1.msra.mxu0 0.0
    %113 = vmatprep.subr.mxu0 0.0
    %114 = vmatpush1.msra.mxu0 0.0
    %115 = vmatprep.subr.mxu0 0.0
    %116 = vmatpush1.msra.mxu0 0.0
    %117 = vmatprep.subr.mxu0 0.0
    %118 = vmatpush1.msra.mxu0 0.0
    %119 = vmatprep.subr.mxu0 0.0
    %120 = vmatpush1.msra.mxu0 0.0
    %121 = vmatprep.subr.mxu0 0.0
    %122 = vmatpush1.msra.mxu0 0.0
    %123 = vmatprep.subr.mxu0 0.0
    %124 = vmatpush1.msra.mxu0 0.0
    %125 = vmatprep.subr.mxu0 0.0
    %126 = vmatpush1.msra.mxu0 0.0
    %127 = vmatprep.subr.mxu0 0.0
    %128 = vmatpush1.msra.mxu0 0.0
    %129 = vmatprep.mubr.f32.mxu0 0.0
    %130 = vmatmul.mubr.f32.gmra.mrb[0].mxu0 %v41
    %v131 = vpop.f32.mrb[0].mxu0
    %v132 = vadd.f32 %v63, %v131
    %v133 = vpop.f32.mrb[0].mxu0
    %134 = vdwg.mxu0
    %v135 = vmax.f32 %v132, 0.0
    %s136 = scalar_lea.vmem [#allocation5], 128
    %v137 = vld [vmem:[%s136] sm:$0xff]
    %v138 = vld [vmem:[%s136 + $0x8] sm:$0xff]
    %v139 = vld [vmem:[%s136 + $0x10] sm:$0xff]
    %v140 = vld [vmem:[%s136 + $0x18] sm:$0xff]
    %v141 = vld [vmem:[%s136 + $0x20] sm:$0xff]
    %v142 = vld [vmem:[%s136 + $0x28] sm:$0xff]
    %v143 = vld [vmem:[%s136 + $0x30] sm:$0xff]
    %v144 = vld [vmem:[%s136 + $0x38] sm:$0xff]
    %v145 = vld [vmem:[%s136 + $0x40] sm:$0xff]
    %v146 = vld [vmem:[%s136 + $0x48] sm:$0xff]
    %v147 = vld [vmem:[%s136 + $0x50] sm:$0xff]
    %v148 = vld [vmem:[%s136 + $0x58] sm:$0xff]
    %v149 = vld [vmem:[%s136 + $0x60] sm:$0xff]
    %v150 = vld [vmem:[%s136 + $0x68] sm:$0xff]
    %v151 = vld [vmem:[%s136 + $0x70] sm:$0xff]
    %v152 = vld [vmem:[%s136 + $0x78] sm:$0xff]
    %s153 = scalar_lea.vmem %s2, 1
    %v154 = vld [vmem:[%s153] sm:$0x1]
    %v156 = vlaneseq
    %v157 = vshrl.u32 %v156, 7
    %v158 = vsub.s32 0, %v157
    %v159 = vrot.slane %v154, %v158
    %161 = vmatprep.subr.mxu0 0.0
    %162 = vmatpush1.msra.mxu0 %v137
    %163 = vmatprep.subr.mxu0 0.0
    %164 = vmatpush1.msra.mxu0 %v138
    %165 = vmatprep.subr.mxu0 0.0
    %166 = vmatpush1.msra.mxu0 %v139
    %167 = vmatprep.subr.mxu0 0.0
    %168 = vmatpush1.msra.mxu0 %v140
    %169 = vmatprep.subr.mxu0 0.0
    %170 = vmatpush1.msra.mxu0 %v141
    %171 = vmatprep.subr.mxu0 0.0
    %172 = vmatpush1.msra.mxu0 %v142
    %173 = vmatprep.subr.mxu0 0.0
    %174 = vmatpush1.msra.mxu0 %v143
    %175 = vmatprep.subr.mxu0 0.0
    %176 = vmatpush1.msra.mxu0 %v144
    %177 = vmatprep.subr.mxu0 0.0
    %178 = vmatpush1.msra.mxu0 %v145
    %179 = vmatprep.subr.mxu0 0.0
    %180 = vmatpush1.msra.mxu0 %v146
    %181 = vmatprep.subr.mxu0 0.0
    %182 = vmatpush1.msra.mxu0 %v147
    %183 = vmatprep.subr.mxu0 0.0
    %184 = vmatpush1.msra.mxu0 %v148
    %185 = vmatprep.subr.mxu0 0.0
    %186 = vmatpush1.msra.mxu0 %v149
    %187 = vmatprep.subr.mxu0 0.0
    %188 = vmatpush1.msra.mxu0 %v150
    %189 = vmatprep.subr.mxu0 0.0
    %190 = vmatpush1.msra.mxu0 %v151
    %191 = vmatprep.subr.mxu0 0.0
    %192 = vmatpush1.msra.mxu0 %v152
    %193 = vmatprep.subr.mxu0 0.0
    %194 = vmatpush1.msra.mxu0 0.0
    %195 = vmatprep.subr.mxu0 0.0
    %196 = vmatpush1.msra.mxu0 0.0
    %197 = vmatprep.subr.mxu0 0.0
    %198 = vmatpush1.msra.mxu0 0.0
    %199 = vmatprep.subr.mxu0 0.0
    %200 = vmatpush1.msra.mxu0 0.0
    %201 = vmatprep.subr.mxu0 0.0
    %202 = vmatpush1.msra.mxu0 0.0
    %203 = vmatprep.subr.mxu0 0.0
    %204 = vmatpush1.msra.mxu0 0.0
    %205 = vmatprep.subr.mxu0 0.0
    %206 = vmatpush1.msra.mxu0 0.0
    %207 = vmatprep.subr.mxu0 0.0
    %208 = vmatpush1.msra.mxu0 0.0
    %209 = vmatprep.subr.mxu0 0.0
    %210 = vmatpush1.msra.mxu0 0.0
    %211 = vmatprep.subr.mxu0 0.0
    %212 = vmatpush1.msra.mxu0 0.0
    %213 = vmatprep.subr.mxu0 0.0
    %214 = vmatpush1.msra.mxu0 0.0
    %215 = vmatprep.subr.mxu0 0.0
    %216 = vmatpush1.msra.mxu0 0.0
    %217 = vmatprep.subr.mxu0 0.0
    %218 = vmatpush1.msra.mxu0 0.0
    %219 = vmatprep.subr.mxu0 0.0
    %220 = vmatpush1.msra.mxu0 0.0
    %221 = vmatprep.subr.mxu0 0.0
    %222 = vmatpush1.msra.mxu0 0.0
    %223 = vmatprep.subr.mxu0 0.0
    %224 = vmatpush1.msra.mxu0 0.0
    %225 = vmatprep.mubr.f32.mxu0 0.0
    %226 = vmatmul.mubr.f32.gmra.mrb[0].mxu0 %v135
    %v227 = vpop.f32.mrb[0].mxu0
    %v228 = vadd.f32 %v159, %v227
    %v229 = vpop.f32.mrb[0].mxu0
    %230 = vdwg.mxu0
    %v231 = vmax.f32 %v228, 0.0
    %232 = vst [vmem:[#allocation7] sm:$0xff] %v231
    // Predicated region
    $region22: #{tpu_custom_call.1} parent=1 // pred_check
      _
    $region23: #{tpu_custom_call.1} parent=1 // pred_check_branch
      %234 = sbr.rel (0) target = $region25
    $region24: #{tpu_custom_call.1} parent=1 // pred_region
      %s236 = ssub.s32 128, 128
      %237 = vsyncadd [#allocation4], %s236
      %s239 = sshll.u32 [#allocation7], 4
      %s240 = int_to_ptr.vmem [resolvable:$true] %s239
      %242 = dma.vmem_to_hbm [thread:$0]  %s240, 128, %s3, [#allocation4]
    $region25: #{tpu_custom_call.1} parent=1 // pred_fallthru
      _
    // Predicated region
    $region26: #{tpu_custom_call.1} parent=1 // pred_check
      _
    $region27: #{tpu_custom_call.1} parent=1 // pred_check_branch
      %244 = sbr.rel (0) target = $region29
    $region28: #{tpu_custom_call.1} parent=1 // pred_region
      %245 = dma.done [#allocation4], 128
    $region29: #{tpu_custom_call.1} parent=1 // pred_fallthru
      _
    %246 = vsyncpa [#allocation3], 1
    %247 = vsyncpa [#allocation6], 1
    %248 = vsyncpa [#allocation4], 1

</llo_original>
